<compile_context>
chip_gen: v5e
topology: v5e:2x2
jax: 0.10.0
libtpu: 0.0.40
codegen_flags: <defaults>
</compile_context>

<pallas_src>
import jax
import jax.numpy as jnp
from jax.experimental import pallas as pl
from jax.experimental.pallas import tpu as pltpu

_LANE = 128      # f32 lane width
_SUBLANE = 8     # f32 sublane width


def _round_up(x, m):
    return (x + m - 1) // m * m


# ---------------------------------------------------------------------------
# Kernel
# ---------------------------------------------------------------------------
def _dqn_kernel(x_ref, w1_ref, b1_ref, w2_ref, b2_ref, w3_ref, b3_ref, o_ref):
    # x_ref : (tile_b, ip)      ip = inputs rounded up to 8
    # w1_ref: (ip, hp)          hp = hidden rounded up to 128
    # w2_ref: (hp, hp)
    # w3_ref: (hp, op)          op = 128 (padded compute)
    # o_ref : (tile_b, outputs) narrow, lane-masked store (outputs == 2)

    # ---- Layer 1 (lin1): small-K MXU dot, f32 accumulation.
    h = jnp.dot(x_ref[...], w1_ref[...], preferred_element_type=jnp.float32)
    h = jnp.maximum(h + b1_ref[...], 0.0)

    # ---- Layer 2 (lin2): (tile_b, 128) @ (128, 128) on the MXU.
    h = jnp.dot(h, w2_ref[...], preferred_element_type=jnp.float32)
    h = jnp.maximum(h + b2_ref[...], 0.0)

    # ---- Layer 3 (lin4): padded 128-wide compute, narrow store of the real
    # output columns only (masked vst; vst slot has slack).
    out = jnp.dot(h, w3_ref[...], preferred_element_type=jnp.float32) + b3_ref[...]
    o_ref[...] = out[:, :o_ref.shape[1]].astype(o_ref.dtype)


# ---------------------------------------------------------------------------
# One-time parameter preparation (transpose + zero-pad to MXU-friendly dims)
# ---------------------------------------------------------------------------
def prepare_params(params):
    """Convert PyTorch-layout (out, in) weights into padded (in, out) kernel
    layout.  Call once (e.g. after each target-network sync), not per forward."""
    w1, b1 = params["lin1_w"], params["lin1_b"]
    w2, b2 = params["lin2_w"], params["lin2_b"]
    w3, b3 = params["lin4_w"], params["lin4_b"]

    inputs = int(w1.shape[1])
    hidden = int(w1.shape[0])
    outputs = int(w3.shape[0])
    ip = _round_up(inputs, _SUBLANE)    # 4  -> 8   (small-K MXU dot)
    hp = _round_up(hidden, _LANE)       # 24 -> 128
    op = _round_up(outputs, _LANE)      # 2  -> 128 (padded compute only)

    def pad_to(a, shape):
        return jnp.pad(a, [(0, s - d) for d, s in zip(a.shape, shape)])

    return {
        "w1": pad_to(w1.T.astype(jnp.float32), (ip, hp)),
        "b1": pad_to(b1.astype(jnp.float32)[None, :], (1, hp)),
        "w2": pad_to(w2.T.astype(jnp.float32), (hp, hp)),
        "b2": pad_to(b2.astype(jnp.float32)[None, :], (1, hp)),
        "w3": pad_to(w3.T.astype(jnp.float32), (hp, op)),
        "b3": pad_to(b3.astype(jnp.float32)[None, :], (1, op)),
        "inputs": inputs,
        "ip": ip,
        "outputs": outputs,
    }


# ---------------------------------------------------------------------------
# Forward wrapper
# ---------------------------------------------------------------------------
def dqn_forward(x, prep, *, tile_b=2048):
    """x: (B, inputs) float32.  prep: output of prepare_params()."""
    inputs, ip, outputs = prep["inputs"], prep["ip"], prep["outputs"]
    w1, b1 = prep["w1"], prep["b1"]
    w2, b2 = prep["w2"], prep["b2"]
    w3, b3 = prep["w3"], prep["b3"]
    hp = w2.shape[0]
    op = w3.shape[1]

    batch = x.shape[0]

    # --- Batch-tile selection ------------------------------------------------
    # Footprint is tiny (~1-2 MiB even at tile_b=2048), so prefer few, large
    # grid steps to amortize the ~0.35us/step pipeline overhead...
    b_al = _round_up(batch, _SUBLANE)
    tb = _round_up(max(_SUBLANE, min(tile_b, b_al)), _SUBLANE)
    # ...but guarantee >= 2 grid steps when the batch allows it, so
    # dimension_semantics=("parallel",) can shard work across v7x's two TCs.
    if b_al > _SUBLANE and pl.cdiv(b_al, tb) < 2:
        tb = _round_up(pl.cdiv(b_al, 2), _SUBLANE)

    b_pad = _round_up(batch, tb)
    grid = (b_pad // tb,)

    # Single pad covers both the ragged batch tail and inputs -> ip columns.
    x = x.astype(jnp.float32)
    if b_pad != batch or ip != inputs:
        x = jnp.pad(x, ((0, b_pad - batch), (0, ip - inputs)))

    flops = 2 * b_pad * (ip * hp + hp * hp + hp * op)
    bytes_accessed = 4 * (b_pad * ip + b_pad * outputs
                          + w1.size + w2.size + w3.size
                          + b1.size + b2.size + b3.size)

    out = pl.pallas_call(
        _dqn_kernel,
        out_shape=jax.ShapeDtypeStruct((b_pad, outputs), jnp.float32),
        grid=grid,
        in_specs=[
            pl.BlockSpec((tb, ip), lambda i: (i, 0)),        # x: advances w/ grid
            pl.BlockSpec((ip, hp), lambda i: (0, 0)),        # weights / biases:
            pl.BlockSpec((1, hp), lambda i: (0, 0)),         # resident in VMEM
            pl.BlockSpec((hp, hp), lambda i: (0, 0)),
            pl.BlockSpec((1, hp), lambda i: (0, 0)),
            pl.BlockSpec((hp, op), lambda i: (0, 0)),
            pl.BlockSpec((1, op), lambda i: (0, 0)),
        ],
        # Narrow output: last dim == full array dim (outputs), so no 128-wide
        # HBM write amplification.
        out_specs=pl.BlockSpec((tb, outputs), lambda i: (i, 0)),
        compiler_params=pltpu.CompilerParams(
            dimension_semantics=("parallel",)),
        cost_estimate=pl.CostEstimate(
            flops=flops, transcendentals=0, bytes_accessed=bytes_accessed),
    )(x, w1, b1, w2, b2, w3, b3)

    # Strip the (tiny, 2-lane-wide) batch padding.
    return out[:batch]


# ---------------------------------------------------------------------------
# Init + pure-JAX reference (PyTorch semantics)
# ---------------------------------------------------------------------------
def init_params(key, inputs, outputs, hidden=24):
    """Deterministic init mirroring nn.Linear's U(-1/sqrt(fan_in), +1/sqrt(fan_in))."""
    ks = jax.random.split(key, 6)

    def lin(kw, kb, fan_in, fan_out):
        bound = 1.0 / jnp.sqrt(fan_in)
        w = jax.random.uniform(kw, (fan_out, fan_in), jnp.float32, -bound, bound)
        b = jax.random.uniform(kb, (fan_out,), jnp.float32, -bound, bound)
        return w, b

    w1, b1 = lin(ks[0], ks[1], inputs, hidden)
    w2, b2 = lin(ks[2], ks[3], hidden, hidden)
    w3, b3 = lin(ks[4], ks[5], hidden, outputs)
    return {
        "lin1_w": w1, "lin1_b": b1,
        "lin2_w": w2, "lin2_b": b2,
        "lin4_w": w3, "lin4_b": b3,
    }


def dqn_reference(x, params):
    h = jnp.maximum(x @ params["lin1_w"].T + params["lin1_b"], 0.0)
    h = jnp.maximum(h @ params["lin2_w"].T + params["lin2_b"], 0.0)
    return h @ params["lin4_w"].T + params["lin4_b"]


if __name__ == "__main__":
    # Small DQN-style shapes: e.g. CartPole (4 observations, 2 actions).
    batch, inputs, outputs, hidden = 8, 4, 2, 24

    key = jax.random.PRNGKey(0)
    k_x, k_p = jax.random.split(key)
    x = jax.random.normal(k_x, (batch, inputs), dtype=jnp.float32)
    params = init_params(k_p, inputs, outputs, hidden)
    prep = prepare_params(params)   # one-time transpose + pad

    out = jax.block_until_ready(dqn_forward(x, prep))
    ref = dqn_reference(x, params)
    assert out.shape == (batch, outputs)
    assert jnp.allclose(out, ref, atol=1e-4, rtol=1e-4)

    # Ragged batch with an explicit small tile (padding path + multi-step grid).
    x2 = jax.random.normal(k_x, (50, inputs), dtype=jnp.float32)
    out2 = jax.block_until_ready(dqn_forward(x2, prep, tile_b=16))
    ref2 = dqn_reference(x2, params)
    assert out2.shape == (50, outputs)
    assert jnp.allclose(out2, ref2, atol=1e-4, rtol=1e-4)

    # Mid-size batch with the default tile: exercises the >=2-grid-step split.
    x3 = jax.random.normal(k_x, (300, inputs), dtype=jnp.float32)
    out3 = jax.block_until_ready(dqn_forward(x3, prep))
    ref3 = dqn_reference(x3, params)
    assert out3.shape == (300, outputs)
    assert jnp.allclose(out3, ref3, atol=1e-4, rtol=1e-4)

    print("KERNEL_OK")
</pallas_src>

<mosaic_0001>
module attributes {stable_mosaic.version = 11 : i64} {
  func.func @_dqn_kernel(%arg0: i32, %arg1: memref<8x8xf32, #tpu.memory_space<vmem>>, %arg2: memref<8x128xf32, #tpu.memory_space<vmem>>, %arg3: memref<1x128xf32, #tpu.memory_space<vmem>>, %arg4: memref<128x128xf32, #tpu.memory_space<vmem>>, %arg5: memref<1x128xf32, #tpu.memory_space<vmem>>, %arg6: memref<128x128xf32, #tpu.memory_space<vmem>>, %arg7: memref<1x128xf32, #tpu.memory_space<vmem>>, %arg8: memref<8x2xf32, #tpu.memory_space<vmem>>) attributes {dimension_semantics = [#tpu.dimension_semantics<parallel>], iteration_bounds = array<i64: 1>, scalar_prefetch = 0 : i64, scratch_operands = 0 : i64, tpu.core_type = #tpu.core_type<tc>, window_params = [{transform_indices = @transform_0, window_bounds = array<i64: 8, 8>}, {pipeline_mode = #tpu.pipeline_mode<synchronous>, transform_indices = @transform_1, window_bounds = array<i64: 8, 128>}, {pipeline_mode = #tpu.pipeline_mode<synchronous>, transform_indices = @transform_2, window_bounds = array<i64: 1, 128>}, {pipeline_mode = #tpu.pipeline_mode<synchronous>, transform_indices = @transform_3, window_bounds = array<i64: 128, 128>}, {pipeline_mode = #tpu.pipeline_mode<synchronous>, transform_indices = @transform_4, window_bounds = array<i64: 1, 128>}, {pipeline_mode = #tpu.pipeline_mode<synchronous>, transform_indices = @transform_5, window_bounds = array<i64: 128, 128>}, {pipeline_mode = #tpu.pipeline_mode<synchronous>, transform_indices = @transform_6, window_bounds = array<i64: 1, 128>}, {transform_indices = @transform_7, window_bounds = array<i64: 8, 2>}]} {
    %c0 = arith.constant 0 : index
    %c0_0 = arith.constant 0 : index
    %0 = vector.load %arg1[%c0, %c0_0] : memref<8x8xf32, #tpu.memory_space<vmem>>, vector<8x8xf32>
    %c0_1 = arith.constant 0 : index
    %c0_2 = arith.constant 0 : index
    %1 = vector.load %arg2[%c0_1, %c0_2] : memref<8x128xf32, #tpu.memory_space<vmem>>, vector<8x128xf32>
    %cst = arith.constant dense<0.000000e+00> : vector<8x128xf32>
    %2 = tpu.matmul %0, %1, %cst {dimension_numbers = #tpu.dot_dimension_numbers<[1], [0], [0], [1], [0, 0, 1, 1], [], []>} : vector<8x8xf32>, vector<8x128xf32>, vector<8x128xf32> -> vector<8x128xf32>
    %c0_3 = arith.constant 0 : index
    %c0_4 = arith.constant 0 : index
    %3 = vector.load %arg3[%c0_3, %c0_4] : memref<1x128xf32, #tpu.memory_space<vmem>>, vector<1x128xf32>
    %4 = vector.broadcast %3 : vector<1x128xf32> to vector<8x128xf32>
    %5 = arith.addf %2, %4 : vector<8x128xf32>
    %cst_5 = arith.constant 0.000000e+00 : f32
    %6 = vector.broadcast %cst_5 : f32 to vector<8x128xf32>
    %7 = arith.maximumf %5, %6 : vector<8x128xf32>
    %c0_6 = arith.constant 0 : index
    %c0_7 = arith.constant 0 : index
    %8 = vector.load %arg4[%c0_6, %c0_7] : memref<128x128xf32, #tpu.memory_space<vmem>>, vector<128x128xf32>
    %cst_8 = arith.constant dense<0.000000e+00> : vector<8x128xf32>
    %9 = tpu.matmul %7, %8, %cst_8 {dimension_numbers = #tpu.dot_dimension_numbers<[1], [0], [0], [1], [0, 0, 1, 1], [], []>} : vector<8x128xf32>, vector<128x128xf32>, vector<8x128xf32> -> vector<8x128xf32>
    %c0_9 = arith.constant 0 : index
    %c0_10 = arith.constant 0 : index
    %10 = vector.load %arg5[%c0_9, %c0_10] : memref<1x128xf32, #tpu.memory_space<vmem>>, vector<1x128xf32>
    %11 = vector.broadcast %10 : vector<1x128xf32> to vector<8x128xf32>
    %12 = arith.addf %9, %11 : vector<8x128xf32>
    %cst_11 = arith.constant 0.000000e+00 : f32
    %13 = vector.broadcast %cst_11 : f32 to vector<8x128xf32>
    %14 = arith.maximumf %12, %13 : vector<8x128xf32>
    %c0_12 = arith.constant 0 : index
    %c0_13 = arith.constant 0 : index
    %15 = vector.load %arg6[%c0_12, %c0_13] : memref<128x128xf32, #tpu.memory_space<vmem>>, vector<128x128xf32>
    %cst_14 = arith.constant dense<0.000000e+00> : vector<8x128xf32>
    %16 = tpu.matmul %14, %15, %cst_14 {dimension_numbers = #tpu.dot_dimension_numbers<[1], [0], [0], [1], [0, 0, 1, 1], [], []>} : vector<8x128xf32>, vector<128x128xf32>, vector<8x128xf32> -> vector<8x128xf32>
    %c0_15 = arith.constant 0 : index
    %c0_16 = arith.constant 0 : index
    %17 = vector.load %arg7[%c0_15, %c0_16] : memref<1x128xf32, #tpu.memory_space<vmem>>, vector<1x128xf32>
    %18 = vector.broadcast %17 : vector<1x128xf32> to vector<8x128xf32>
    %19 = arith.addf %16, %18 : vector<8x128xf32>
    %20 = vector.extract_strided_slice %19 {offsets = [0, 0], sizes = [8, 2], strides = [1, 1]} : vector<8x128xf32> to vector<8x2xf32>
    %c0_17 = arith.constant 0 : index
    %c0_18 = arith.constant 0 : index
    %21 = vector.load %arg8[%c0_17, %c0_18] : memref<8x2xf32, #tpu.memory_space<vmem>>, vector<8x2xf32>
    tpu.vector_store %arg8[%c0_17, %c0_18], %20 {strides = array<i32>} : memref<8x2xf32, #tpu.memory_space<vmem>>, vector<8x2xf32>,
    return
  }
  func.func @transform_0(%arg0: i32) -> (i32, i32) {
    %c0_i32 = arith.constant 0 : i32
    %c0_i32_0 = arith.constant 0 : i32
    return %arg0, %c0_i32 : i32, i32
  }
  func.func @transform_1(%arg0: i32) -> (i32, i32) {
    %c0_i32 = arith.constant 0 : i32
    %c0_i32_0 = arith.constant 0 : i32
    %c0_i32_1 = arith.constant 0 : i32
    return %c0_i32, %c0_i32_0 : i32, i32
  }
  func.func @transform_2(%arg0: i32) -> (i32, i32) {
    %c0_i32 = arith.constant 0 : i32
    %c0_i32_0 = arith.constant 0 : i32
    %c0_i32_1 = arith.constant 0 : i32
    return %c0_i32, %c0_i32_0 : i32, i32
  }
  func.func @transform_3(%arg0: i32) -> (i32, i32) {
    %c0_i32 = arith.constant 0 : i32
    %c0_i32_0 = arith.constant 0 : i32
    %c0_i32_1 = arith.constant 0 : i32
    return %c0_i32, %c0_i32_0 : i32, i32
  }
  func.func @transform_4(%arg0: i32) -> (i32, i32) {
    %c0_i32 = arith.constant 0 : i32
    %c0_i32_0 = arith.constant 0 : i32
    %c0_i32_1 = arith.constant 0 : i32
    return %c0_i32, %c0_i32_0 : i32, i32
  }
  func.func @transform_5(%arg0: i32) -> (i32, i32) {
    %c0_i32 = arith.constant 0 : i32
    %c0_i32_0 = arith.constant 0 : i32
    %c0_i32_1 = arith.constant 0 : i32
    return %c0_i32, %c0_i32_0 : i32, i32
  }
  func.func @transform_6(%arg0: i32) -> (i32, i32) {
    %c0_i32 = arith.constant 0 : i32
    %c0_i32_0 = arith.constant 0 : i32
    %c0_i32_1 = arith.constant 0 : i32
    return %c0_i32, %c0_i32_0 : i32, i32
  }
  func.func @transform_7(%arg0: i32) -> (i32, i32) {
    %c0_i32 = arith.constant 0 : i32
    %c0_i32_0 = arith.constant 0 : i32
    return %arg0, %c0_i32 : i32, i32
  }
}

</mosaic_0001>

<llo_original>
// kernel: tpu_custom_call.1
$region0: #{tpu_custom_call.1}
  #allocation0 [shape = 'u32[]', space=smem, size = 0x4, offset = 0x4, fixed_abs, tag = 'smem constant byte address 0x4 - core index']
  #allocation1 [shape = 'u32[72,128]{1,0:T(1,128)}', space=vmem, size = 0x9000, scoped, tag = 'internal scratch']
  %s0 = inlined_call_operand.hbm [shape: f32[8,8], index: 0, kind: input, shape index: {}]
  %s1 = inlined_call_operand.hbm [shape: f32[8,128], index: 1, kind: input, shape index: {}]
  %s2 = inlined_call_operand.vmem [shape: f32[1,128], index: 2, kind: input, shape index: {}]
  %s3 = inlined_call_operand.hbm [shape: f32[128,128], index: 3, kind: input, shape index: {}]
  %s4 = inlined_call_operand.vmem [shape: f32[1,128], index: 4, kind: input, shape index: {}]
  %s5 = inlined_call_operand.hbm [shape: f32[128,128], index: 5, kind: input, shape index: {}]
  %s6 = inlined_call_operand.vmem [shape: f32[1,128], index: 6, kind: input, shape index: {}]
  %s7 = inlined_call_operand.vmem [shape: f32[8,2], index: 7, kind: output, shape index: {}]
  %s8 = sld [smem:[#allocation0]]
  $region54: #{tpu_custom_call.1} parent=0
    _
  %s10 = ssub.s32 1, %s8
  %s11 = scalar_select 0, %s10, %s8
  $region1: #{tpu_custom_call.1} parent=0
    #allocation2 [shape = 'u8[4096]{0}', space=vmem, size = 0x1000, scoped, tag = 'input window, operand 0, single buffered']
    #allocation3 [shape = 's32[1]{0}', space=sflag, size = 0x4, scoped, tag = 'scoped memory for tpu_custom_call.1']
    #allocation4 [shape = 'u8[4096]{0}', space=vmem, size = 0x1000, scoped, tag = 'input window, operand 1, single buffered']
    #allocation5 [shape = 's32[1]{0}', space=sflag, size = 0x4, scoped, tag = 'scoped memory for tpu_custom_call.1']
    #allocation6 [shape = 'u8[65536]{0}', space=vmem, size = 0x10000, scoped, tag = 'input window, operand 3, single buffered']
    #allocation7 [shape = 'u8[65536]{0}', space=vmem, size = 0x10000, scoped, tag = 'input window, operand 5, single buffered']
    #allocation8 [shape = 's32[1]{0}', space=sflag, size = 0x4, scoped, tag = 'scoped memory for tpu_custom_call.1']
    %12 = vsyncpa [#allocation3], 0
    %13 = vsyncpa [#allocation5], 0
    %14 = vsyncpa [#allocation8], 0
    // Predicated region
    $region2: #{tpu_custom_call.1} parent=1 // pred_check
      _
    $region3: #{tpu_custom_call.1} parent=1 // pred_check_branch
      %16 = sbr.rel (0) target = $region5
    $region4: #{tpu_custom_call.1} parent=1 // pred_region
      %18 = vsyncadd [#allocation3], 0
      %s20 = sshll.u32 %s0, 4
      %s21 = int_to_ptr.hbm [resolvable:$true] %s20
      %s22 = sshll.u32 [#allocation2], 4
      %s23 = int_to_ptr.vmem [resolvable:$true] %s22
      %25 = dma.hbm_to_vmem [thread:$0]  %s21, 128, %s23, [#allocation3]
    $region5: #{tpu_custom_call.1} parent=1 // pred_fallthru
      _
    // Predicated region
    $region6: #{tpu_custom_call.1} parent=1 // pred_check
      _
    $region7: #{tpu_custom_call.1} parent=1 // pred_check_branch
      %27 = sbr.rel (0) target = $region9
    $region8: #{tpu_custom_call.1} parent=1 // pred_region
      %29 = vsyncadd [#allocation5], 0
      %s31 = sshll.u32 %s1, 4
      %s32 = int_to_ptr.hbm [resolvable:$true] %s31
      %s33 = sshll.u32 [#allocation4], 4
      %s34 = int_to_ptr.vmem [resolvable:$true] %s33
      %36 = dma.hbm_to_vmem [thread:$0]  %s32, 128, %s34, [#allocation5]
    $region9: #{tpu_custom_call.1} parent=1 // pred_fallthru
      _
    // Predicated region
    $region10: #{tpu_custom_call.1} parent=1 // pred_check
      _
    $region11: #{tpu_custom_call.1} parent=1 // pred_check_branch
      %38 = sbr.rel (0) target = $region13
    $region12: #{tpu_custom_call.1} parent=1 // pred_region
      _
    $region13: #{tpu_custom_call.1} parent=1 // pred_fallthru
      _
    // Predicated region
    $region14: #{tpu_custom_call.1} parent=1 // pred_check
      _
    $region15: #{tpu_custom_call.1} parent=1 // pred_check_branch
      %40 = sbr.rel (0) target = $region17
    $region16: #{tpu_custom_call.1} parent=1 // pred_region
      %42 = vsyncadd [#allocation5], 0
      %s43 = sshll.u32 %s3, 4
      %s44 = int_to_ptr.hbm [resolvable:$true] %s43
      %s45 = sshll.u32 [#allocation6], 4
      %s46 = int_to_ptr.vmem [resolvable:$true] %s45
      %51 = dma.hbm_to_vmem [thread:$0]  %s44, 2048, %s46, [#allocation5], 128, 128, 8
    $region17: #{tpu_custom_call.1} parent=1 // pred_fallthru
      _
    // Predicated region
    $region18: #{tpu_custom_call.1} parent=1 // pred_check
      _
    $region19: #{tpu_custom_call.1} parent=1 // pred_check_branch
      %53 = sbr.rel (0) target = $region21
    $region20: #{tpu_custom_call.1} parent=1 // pred_region
      _
    $region21: #{tpu_custom_call.1} parent=1 // pred_fallthru
      _
    // Predicated region
    $region22: #{tpu_custom_call.1} parent=1 // pred_check
      _
    $region23: #{tpu_custom_call.1} parent=1 // pred_check_branch
      %55 = sbr.rel (0) target = $region25
    $region24: #{tpu_custom_call.1} parent=1 // pred_region
      %57 = vsyncadd [#allocation8], 0
      %s58 = sshll.u32 %s5, 4
      %s59 = int_to_ptr.hbm [resolvable:$true] %s58
      %s60 = sshll.u32 [#allocation7], 4
      %s61 = int_to_ptr.vmem [resolvable:$true] %s60
      %66 = dma.hbm_to_vmem [thread:$0]  %s59, 2048, %s61, [#allocation8], 128, 128, 8
    $region25: #{tpu_custom_call.1} parent=1 // pred_fallthru
      _
    // Predicated region
    $region26: #{tpu_custom_call.1} parent=1 // pred_check
      _
    $region27: #{tpu_custom_call.1} parent=1 // pred_check_branch
      %68 = sbr.rel (0) target = $region29
    $region28: #{tpu_custom_call.1} parent=1 // pred_region
      _
    $region29: #{tpu_custom_call.1} parent=1 // pred_fallthru
      _
    // Predicated region
    $region30: #{tpu_custom_call.1} parent=1 // pred_check
      _
    $region31: #{tpu_custom_call.1} parent=1 // pred_check_branch
      %70 = sbr.rel (0) target = $region33
    $region32: #{tpu_custom_call.1} parent=1 // pred_region
      %72 = dma.done [#allocation3], 128
    $region33: #{tpu_custom_call.1} parent=1 // pred_fallthru
      _
    // Predicated region
    $region34: #{tpu_custom_call.1} parent=1 // pred_check
      _
    $region35: #{tpu_custom_call.1} parent=1 // pred_check_branch
      %74 = sbr.rel (0) target = $region37
    $region36: #{tpu_custom_call.1} parent=1 // pred_region
      %76 = dma.done [#allocation5], 128
    $region37: #{tpu_custom_call.1} parent=1 // pred_fallthru
      _
    // Predicated region
    $region38: #{tpu_custom_call.1} parent=1 // pred_check
      _
    $region39: #{tpu_custom_call.1} parent=1 // pred_check_branch
      %78 = sbr.rel (0) target = $region41
    $region40: #{tpu_custom_call.1} parent=1 // pred_region
      %80 = dma.done [#allocation5], 2048
    $region41: #{tpu_custom_call.1} parent=1 // pred_fallthru
      _
    // Predicated region
    $region42: #{tpu_custom_call.1} parent=1 // pred_check
      _
    $region43: #{tpu_custom_call.1} parent=1 // pred_check_branch
      %82 = sbr.rel (0) target = $region45
    $region44: #{tpu_custom_call.1} parent=1 // pred_region
      %84 = dma.done [#allocation8], 2048
    $region45: #{tpu_custom_call.1} parent=1 // pred_fallthru
      _
    %v85 = vld [vmem:[#allocation2] sm:$0xff]
    %v86 = vld [vmem:[#allocation4] sm:$0xff]
    %v87 = vld [vmem:[%s2] sm:$0x1]
    %v89 = vperm.slane %v87, 0
    %vm91 = vcmask 64512
    %v93 = vsel %vm91, %v85, 0
    %95 = vmatpush.msra.mxu0 0.0
    %96 = vmatpush.msra.mxu0 0.0
    %97 = vmatpush.msra.mxu0 0.0
    %98 = vmatpush.msra.mxu0 0.0
    %99 = vmatpush.msra.mxu0 0.0
    %100 = vmatpush.msra.mxu0 0.0
    %101 = vmatpush.msra.mxu0 0.0
    %102 = vmatpush.msra.mxu0 0.0
    %103 = vmatpush.msra.mxu0 0.0
    %104 = vmatpush.msra.mxu0 0.0
    %105 = vmatpush.msra.mxu0 0.0
    %106 = vmatpush.msra.mxu0 0.0
    %107 = vmatpush.msra.mxu0 0.0
    %108 = vmatpush.msra.mxu0 0.0
    %109 = vmatpush.msra.mxu0 0.0
    %110 = vmatpush.msra.mxu0 %v86
    %111 = vmatmul.f32.gmra.mxu0 %v93
    %v112 = vpop.f32.mrf.mxu0
    %v113 = vadd.f32 %v89, %v112
    %114 = vdwg.mxu0
    %v115 = vmax.f32 %v113, 0.0
    %v116 = vld [vmem:[#allocation6] sm:$0xff]
    %v117 = vld [vmem:[#allocation6 + $0x8] sm:$0xff]
    %v118 = vld [vmem:[#allocation6 + $0x10] sm:$0xff]
    %v119 = vld [vmem:[#allocation6 + $0x18] sm:$0xff]
    %v120 = vld [vmem:[#allocation6 + $0x20] sm:$0xff]
    %v121 = vld [vmem:[#allocation6 + $0x28] sm:$0xff]
    %v122 = vld [vmem:[#allocation6 + $0x30] sm:$0xff]
    %v123 = vld [vmem:[#allocation6 + $0x38] sm:$0xff]
    %v124 = vld [vmem:[#allocation6 + $0x40] sm:$0xff]
    %v125 = vld [vmem:[#allocation6 + $0x48] sm:$0xff]
    %v126 = vld [vmem:[#allocation6 + $0x50] sm:$0xff]
    %v127 = vld [vmem:[#allocation6 + $0x58] sm:$0xff]
    %v128 = vld [vmem:[#allocation6 + $0x60] sm:$0xff]
    %v129 = vld [vmem:[#allocation6 + $0x68] sm:$0xff]
    %v130 = vld [vmem:[#allocation6 + $0x70] sm:$0xff]
    %v131 = vld [vmem:[#allocation6 + $0x78] sm:$0xff]
    %v132 = vld [vmem:[%s4] sm:$0x1]
    %v134 = vperm.slane %v132, 0
    %136 = vmatpush.msra.mxu0 %v131
    %137 = vmatpush.msra.mxu0 %v130
    %138 = vmatpush.msra.mxu0 %v129
    %139 = vmatpush.msra.mxu0 %v128
    %140 = vmatpush.msra.mxu0 %v127
    %141 = vmatpush.msra.mxu0 %v126
    %142 = vmatpush.msra.mxu0 %v125
    %143 = vmatpush.msra.mxu0 %v124
    %144 = vmatpush.msra.mxu0 %v123
    %145 = vmatpush.msra.mxu0 %v122
    %146 = vmatpush.msra.mxu0 %v121
    %147 = vmatpush.msra.mxu0 %v120
    %148 = vmatpush.msra.mxu0 %v119
    %149 = vmatpush.msra.mxu0 %v118
    %150 = vmatpush.msra.mxu0 %v117
    %151 = vmatpush.msra.mxu0 %v116
    %152 = vmatmul.f32.gmra.mxu0 %v115
    %v153 = vpop.f32.mrf.mxu0
    %v154 = vadd.f32 %v134, %v153
    %155 = vdwg.mxu0
    %v156 = vmax.f32 %v154, 0.0
    %v157 = vld [vmem:[#allocation7] sm:$0xff]
    %v158 = vld [vmem:[#allocation7 + $0x8] sm:$0xff]
    %v159 = vld [vmem:[#allocation7 + $0x10] sm:$0xff]
    %v160 = vld [vmem:[#allocation7 + $0x18] sm:$0xff]
    %v161 = vld [vmem:[#allocation7 + $0x20] sm:$0xff]
    %v162 = vld [vmem:[#allocation7 + $0x28] sm:$0xff]
    %v163 = vld [vmem:[#allocation7 + $0x30] sm:$0xff]
    %v164 = vld [vmem:[#allocation7 + $0x38] sm:$0xff]
    %v165 = vld [vmem:[#allocation7 + $0x40] sm:$0xff]
    %v166 = vld [vmem:[#allocation7 + $0x48] sm:$0xff]
    %v167 = vld [vmem:[#allocation7 + $0x50] sm:$0xff]
    %v168 = vld [vmem:[#allocation7 + $0x58] sm:$0xff]
    %v169 = vld [vmem:[#allocation7 + $0x60] sm:$0xff]
    %v170 = vld [vmem:[#allocation7 + $0x68] sm:$0xff]
    %v171 = vld [vmem:[#allocation7 + $0x70] sm:$0xff]
    %v172 = vld [vmem:[#allocation7 + $0x78] sm:$0xff]
    %v173 = vld [vmem:[%s6] sm:$0x1]
    %v175 = vperm.slane %v173, 0
    %177 = vmatpush.msra.mxu0 %v172
    %178 = vmatpush.msra.mxu0 %v171
    %179 = vmatpush.msra.mxu0 %v170
    %180 = vmatpush.msra.mxu0 %v169
    %181 = vmatpush.msra.mxu0 %v168
    %182 = vmatpush.msra.mxu0 %v167
    %183 = vmatpush.msra.mxu0 %v166
    %184 = vmatpush.msra.mxu0 %v165
    %185 = vmatpush.msra.mxu0 %v164
    %186 = vmatpush.msra.mxu0 %v163
    %187 = vmatpush.msra.mxu0 %v162
    %188 = vmatpush.msra.mxu0 %v161
    %189 = vmatpush.msra.mxu0 %v160
    %190 = vmatpush.msra.mxu0 %v159
    %191 = vmatpush.msra.mxu0 %v158
    %192 = vmatpush.msra.mxu0 %v157
    %193 = vmatmul.f32.gmra.mxu0 %v156
    %v194 = vpop.f32.mrf.mxu0
    %v195 = vadd.f32 %v175, %v194
    %196 = vdwg.mxu0
    %vm197 = vcmask 15360
    %198 = vst.msk [vmem:[%s7] sm:$0xff] %vm197, %v195
    // Predicated region
    $region46: #{tpu_custom_call.1} parent=1 // pred_check
      _
    $region47: #{tpu_custom_call.1} parent=1 // pred_check_branch
      %200 = sbr.rel (0) target = $region49
    $region48: #{tpu_custom_call.1} parent=1 // pred_region
      _
    $region49: #{tpu_custom_call.1} parent=1 // pred_fallthru
      _
    // Predicated region
    $region50: #{tpu_custom_call.1} parent=1 // pred_check
      _
    $region51: #{tpu_custom_call.1} parent=1 // pred_check_branch
      %202 = sbr.rel (0) target = $region53
    $region52: #{tpu_custom_call.1} parent=1 // pred_region
      _
    $region53: #{tpu_custom_call.1} parent=1 // pred_fallthru
      _
    %203 = vsyncpa [#allocation3], 1
    %204 = vsyncpa [#allocation5], 1
    %205 = vsyncpa [#allocation8], 1

</llo_original>
